<compile_context>
chip_gen: v7x
topology: tpu7x:2x2x1
jax: 0.10.0
libtpu: 0.0.40
codegen_flags: <defaults>
</compile_context>

<pallas_src>
import jax
import jax.numpy as jnp
from jax.experimental import pallas as pl
from jax.experimental.pallas import tpu as pltpu


_LANES = 128
_MAX_COLS = 2048          # lane-dense slab width cap


# ---------------------------------------------------------------------------
# Hardware-generation helpers
# ---------------------------------------------------------------------------
def _chip_generation() -> int:
    """Best-effort TPU generation from device_kind (e.g. 'TPU v6 lite')."""
    try:
        kind = jax.devices()[0].device_kind.lower()
    except Exception:  # pragma: no cover — defensive
        return 6
    for gen in (7, 6, 5, 4, 3, 2):
        if f"v{gen}" in kind:
            return gen
    return 6


def _dimension_semantics(gen):
    # Real 2-TensorCore sharding on v7x; "parallel" is effectively a no-op on
    # single-TC v5e/v6e but harmless.
    if gen >= 7 and hasattr(pltpu, "CORE_PARALLEL"):
        return (pltpu.CORE_PARALLEL,)
    return ("parallel",)


def _min_tile_rows(itemsize: int) -> int:
    # Packed-sublane minimum: 8 rows for 4-byte, 16 for 2-byte, 32 for 1-byte.
    return 8 * max(1, 4 // itemsize)


def _choose_tiling(n, itemsize, gen):
    """Pick (rows, cols, tile_rows) for a lane-dense 2-D slab, or None."""
    min_tr = _min_tile_rows(itemsize)
    if n % _LANES != 0 or n < min_tr * _LANES:
        return None           # tiny / non-lane-aligned -> fused jnp fallback
    cols = _LANES
    while cols * 2 <= _MAX_COLS and n % (cols * 2) == 0:
        cols *= 2
    rows = n // cols

    # v5e: 16 MiB scoped VMEM default -> <=3 MiB blocks (in+out double-
    # buffered = ~12 MiB). v6e/v7x: 32 MiB scoped -> <=4 MiB blocks.
    max_block_bytes = (3 << 20) if gen <= 5 else (4 << 20)
    max_tr = max(min_tr, max_block_bytes // (cols * itemsize))
    # Never a single big block once past ~256 KiB: keep >=4 row tiles so the
    # DMA-in / compute / DMA-out pipeline actually overlaps.
    if n * itemsize > (256 << 10):
        max_tr = min(max_tr, max(min_tr, pl.cdiv(rows, 4)))

    tr = min(rows, max_tr)
    if tr < rows:
        # Tiled path: round down to a packed-sublane multiple so stores stay
        # unmasked; partial last block handled by pl.cdiv grid.
        tr = max(min_tr, (tr // min_tr) * min_tr)
    # else tr == rows: full-extent block along that dim (always legal).
    return rows, cols, tr


# ---------------------------------------------------------------------------
# Pallas kernels: elementwise grad * gain (gain read from SMEM)
# ---------------------------------------------------------------------------
def _scale_kernel_native(gain_ref, g_ref, o_ref):
    # Compute in the gradient's own dtype (f32, or bf16 on v6e/v7x VALU).
    o_ref[...] = g_ref[...] * gain_ref[0].astype(o_ref.dtype)


def _scale_kernel_f32(gain_ref, g_ref, o_ref):
    # f32 compute path (bf16 on v5e has no bf16 VALU; also non-float dtypes).
    o_ref[...] = (g_ref[...].astype(jnp.float32) * gain_ref[0]).astype(o_ref.dtype)


def _scale_grad_pallas(g, grad_gain):
    """grad * grad_gain via a tiled Pallas kernel; None if shape not eligible."""
    itemsize = jnp.dtype(g.dtype).itemsize
    gen = _chip_generation()
    tiling = _choose_tiling(g.size, itemsize, gen)
    if tiling is None:
        return None
    rows, cols, tr = tiling

    native = (g.dtype == jnp.float32) or (
        g.dtype in (jnp.bfloat16, jnp.float16) and gen >= 6)
    kernel = _scale_kernel_native if native else _scale_kernel_f32

    g2d = g.reshape(rows, cols)
    gain_smem = jnp.full((1,), grad_gain, dtype=jnp.float32)
    n_bytes = g.size * itemsize

    out2d = pl.pallas_call(
        kernel,
        out_shape=jax.ShapeDtypeStruct((rows, cols), g.dtype),
        grid=(pl.cdiv(rows, tr),),
        in_specs=[
            pl.BlockSpec(memory_space=pltpu.MemorySpace.SMEM),  # gain scalar
            pl.BlockSpec((tr, cols), lambda i: (i, 0)),         # grad tile
        ],
        out_specs=pl.BlockSpec((tr, cols), lambda i: (i, 0)),
        input_output_aliases={1: 0},                            # scale in place
        compiler_params=pltpu.CompilerParams(
            dimension_semantics=_dimension_semantics(gen)),
        cost_estimate=pl.CostEstimate(
            flops=g.size, transcendentals=0, bytes_accessed=2 * n_bytes),
    )(gain_smem, g2d)
    return out2d.reshape(g.shape)


def _scale_grad(g, grad_gain):
    out = _scale_grad_pallas(g, grad_gain)
    if out is not None:
        return out
    # Tiny / non-lane-aligned gradients: a fused XLA multiply is at least as
    # good as a standalone kernel launch (see header note).
    return (g.astype(jnp.float32) * jnp.float32(grad_gain)).astype(g.dtype)


# ---------------------------------------------------------------------------
# ParamsWithGradGain equivalent
# ---------------------------------------------------------------------------
def make_params_with_grad_gain(grad_gain=1.0):
    """Returns forward(param) -> param with the grad-gain hook in backward."""
    # TODO(synk): nn.Parameter / register_buffer bookkeeping has no JAX
    # equivalent; the buffer case (grad_gain == 0) is modelled as a zero
    # cotangent rather than PyTorch's None-grad.
    grad_gain = float(grad_gain)

    @jax.custom_vjp
    def forward(param):
        # PyTorch forward() just returns the stored tensor — pure identity,
        # no Pallas copy (zero HBM traffic, zero launch overhead).
        return param

    def fwd(param):
        return param, None

    def bwd(_, g):
        if grad_gain == 1.0:
            return (g,)
        if grad_gain == 0.0:
            # Buffer semantics: no gradient flows; no kernel launch needed.
            return (jnp.zeros_like(g),)
        return (_scale_grad(g, grad_gain),)

    forward.defvjp(fwd, bwd)
    return forward


# ---------------------------------------------------------------------------
# Demo / self-test
# ---------------------------------------------------------------------------
if __name__ == "__main__":
    key = jax.random.PRNGKey(0)
    k1, k2 = jax.random.split(key)

    # Small lane-dense parameter: single-block Pallas backward path.
    param = jax.random.normal(k1, (64, 256), dtype=jnp.float32)

    # --- grad_gain = 2.0: forward identity, backward scales by 2 (Pallas) ---
    forward2 = make_params_with_grad_gain(grad_gain=2.0)
    out = jax.block_until_ready(forward2(param))
    assert out.shape == param.shape and out.dtype == param.dtype
    assert bool(jnp.allclose(out, param))
    g2 = jax.block_until_ready(jax.grad(lambda p: jnp.sum(forward2(p)))(param))
    assert bool(jnp.allclose(g2, jnp.full_like(param, 2.0)))

    # --- grad_gain = 1.0: pass-through cotangent ---
    forward1 = make_params_with_grad_gain(grad_gain=1.0)
    g1 = jax.block_until_ready(jax.grad(lambda p: jnp.sum(forward1(p)))(param))
    assert bool(jnp.allclose(g1, jnp.ones_like(param)))

    # --- grad_gain = 0.0: buffer semantics, zero cotangent ---
    forward0 = make_params_with_grad_gain(grad_gain=0.0)
    g0 = jax.block_until_ready(jax.grad(lambda p: jnp.sum(forward0(p)))(param))
    assert bool(jnp.allclose(g0, jnp.zeros_like(param)))

    # --- Larger, awkwardly-shaped parameter: exercises the multi-tile grid
    #     (pl.cdiv) with a partial last block and the >=4-tile pipeline rule.
    param_big = jax.random.normal(k2, (1000, 1024), dtype=jnp.float32)
    forward_half = make_params_with_grad_gain(grad_gain=0.5)
    gb = jax.block_until_ready(
        jax.grad(lambda p: jnp.sum(forward_half(p)))(param_big))
    assert bool(jnp.allclose(gb, jnp.full_like(param_big, 0.5)))

    # --- bf16 gradient: native-dtype compute on v6e/v7x, f32 path on v5e ---
    param_bf16 = jax.random.normal(k1, (64, 256), dtype=jnp.bfloat16)
    forward3 = make_params_with_grad_gain(grad_gain=3.0)
    g3 = jax.block_until_ready(
        jax.grad(lambda p: jnp.sum(forward3(p).astype(jnp.float32)))(param_bf16))
    assert bool(jnp.allclose(g3.astype(jnp.float32), 3.0))

    print("KERNEL_OK")
</pallas_src>

<mosaic_0001>
module attributes {stable_mosaic.version = 11 : i64} {
  func.func @_scale_kernel_native(%arg0: i32, %arg1: memref<1xf32, #tpu.memory_space<smem>>, %arg2: memref<8x2048xf32, #tpu.memory_space<vmem>>, %arg3: memref<8x2048xf32, #tpu.memory_space<vmem>>) attributes {dimension_semantics = [#tpu.dimension_semantics<parallel>], iteration_bounds = array<i64: 1>, scalar_prefetch = 0 : i64, scratch_operands = 0 : i64, tpu.core_type = #tpu.core_type<tc>, window_params = [{transform_indices = @transform_0, window_bounds = array<i64: 1>}, {transform_indices = @transform_1, window_bounds = array<i64: 8, 2048>}, {transform_indices = @transform_2, window_bounds = array<i64: 8, 2048>}]} {
    %c0 = arith.constant 0 : index
    %c0_0 = arith.constant 0 : index
    %0 = vector.load %arg2[%c0, %c0_0] : memref<8x2048xf32, #tpu.memory_space<vmem>>, vector<8x2048xf32>
    %c0_1 = arith.constant 0 : index
    %1 = memref.load %arg1[%c0_1] : memref<1xf32, #tpu.memory_space<smem>>
    %2 = vector.broadcast %1 : f32 to vector<8x2048xf32>
    %3 = arith.mulf %0, %2 : vector<8x2048xf32>
    %c0_2 = arith.constant 0 : index
    %c0_3 = arith.constant 0 : index
    %4 = vector.load %arg3[%c0_2, %c0_3] : memref<8x2048xf32, #tpu.memory_space<vmem>>, vector<8x2048xf32>
    tpu.vector_store %arg3[%c0_2, %c0_3], %3 {strides = array<i32>} : memref<8x2048xf32, #tpu.memory_space<vmem>>, vector<8x2048xf32>,
    return
  }
  func.func @transform_0(%arg0: i32) -> i32 {
    %c0_i32 = arith.constant 0 : i32
    %c0_i32_0 = arith.constant 0 : i32
    return %c0_i32 : i32
  }
  func.func @transform_1(%arg0: i32) -> (i32, i32) {
    %c0_i32 = arith.constant 0 : i32
    %c0_i32_0 = arith.constant 0 : i32
    return %arg0, %c0_i32 : i32, i32
  }
  func.func @transform_2(%arg0: i32) -> (i32, i32) {
    %c0_i32 = arith.constant 0 : i32
    %c0_i32_0 = arith.constant 0 : i32
    return %arg0, %c0_i32 : i32, i32
  }
}

</mosaic_0001>

<llo_original>
// kernel: tpu_custom_call.1
$region0: #{tpu_custom_call.1}
  #allocation0 [shape = 'u32[]', space=smem, size = 0x4, offset = 0x4, fixed_abs, tag = 'smem constant byte address 0x4 - core index']
  #allocation1 [shape = 'u32[144,128]{1,0:T(1,128)}', space=vmem, size = 0x12000, scoped, tag = 'internal scratch']
  #allocation2 [shape = 'f32[1]{0:T(128)S(6)}', space=smem, size = 0x200, scoped, tag = 'scoped memory for tpu_custom_call.1']
  %s0 = inlined_call_operand.<no memory space> [shape: f32[1], index: 0, kind: input, shape index: {}]
  %s1 = inlined_call_operand.hbm [shape: f32[8,2048], index: 1, kind: input, shape index: {}, may-alias: {1,2}]
  %s2 = inlined_call_operand.hbm [shape: f32[8,2048], index: 2, kind: output, shape index: {}, may-alias: {1,2}]
  %s3 = sld [smem:[#allocation0]]
  $region22: #{tpu_custom_call.1} parent=0
    _
  %s5 = ssub.s32 1, %s3
  %s6 = scalar_select 0, %s5, %s3
  %7 = sst [smem:[#allocation2]] %s0
  $region1: #{tpu_custom_call.1} parent=0
    #allocation3 [shape = 'u8[65536]{0}', space=vmem, size = 0x10000, scoped, tag = 'input window, operand 1, single buffered']
    #allocation4 [shape = 's32[1]{0}', space=sflag, size = 0x4, scoped, tag = 'scoped memory for tpu_custom_call.1']
    #allocation5 [shape = 's32[1]{0}', space=sflag, size = 0x4, scoped, tag = 'scoped memory for tpu_custom_call.1']
    #allocation6 [shape = 'u8[65536]{0}', space=vmem, size = 0x10000, scoped, tag = 'output window, operand 0, single buffered']
    %8 = vsyncpa [#allocation4], 0
    %9 = vsyncpa [#allocation5], 0
    // Predicated region
    $region2: #{tpu_custom_call.1} parent=1 // pred_check
      _
    $region3: #{tpu_custom_call.1} parent=1 // pred_check_branch
      %11 = sbr.rel (0) target = $region5
    $region4: #{tpu_custom_call.1} parent=1 // pred_region
      _
    $region5: #{tpu_custom_call.1} parent=1 // pred_fallthru
      _
    // Predicated region
    $region6: #{tpu_custom_call.1} parent=1 // pred_check
      _
    $region7: #{tpu_custom_call.1} parent=1 // pred_check_branch
      %13 = sbr.rel (0) target = $region9
    $region8: #{tpu_custom_call.1} parent=1 // pred_region
      %s15 = ssub.s32 2048, 2048
      %16 = vsyncadd [#allocation4], %s15
      %s18 = sshll.u32 [#allocation3], 4
      %s19 = int_to_ptr.vmem [resolvable:$true] %s18
      %21 = dma.hbm_to_vmem [thread:$0]  %s1, 2048, %s19, [#allocation4]
    $region9: #{tpu_custom_call.1} parent=1 // pred_fallthru
      _
    // Predicated region
    $region10: #{tpu_custom_call.1} parent=1 // pred_check
      _
    $region11: #{tpu_custom_call.1} parent=1 // pred_check_branch
      %23 = sbr.rel (0) target = $region13
    $region12: #{tpu_custom_call.1} parent=1 // pred_region
      %24 = dma.done [#allocation4], 2048
    $region13: #{tpu_custom_call.1} parent=1 // pred_fallthru
      _
    %v25 = vld [vmem:[#allocation3] sm:$0xff]
    %v26 = vld [vmem:[#allocation3 + $0x8] sm:$0xff]
    %v27 = vld [vmem:[#allocation3 + $0x10] sm:$0xff]
    %v28 = vld [vmem:[#allocation3 + $0x18] sm:$0xff]
    %v29 = vld [vmem:[#allocation3 + $0x20] sm:$0xff]
    %v30 = vld [vmem:[#allocation3 + $0x28] sm:$0xff]
    %v31 = vld [vmem:[#allocation3 + $0x30] sm:$0xff]
    %v32 = vld [vmem:[#allocation3 + $0x38] sm:$0xff]
    %v33 = vld [vmem:[#allocation3 + $0x40] sm:$0xff]
    %v34 = vld [vmem:[#allocation3 + $0x48] sm:$0xff]
    %v35 = vld [vmem:[#allocation3 + $0x50] sm:$0xff]
    %v36 = vld [vmem:[#allocation3 + $0x58] sm:$0xff]
    %v37 = vld [vmem:[#allocation3 + $0x60] sm:$0xff]
    %v38 = vld [vmem:[#allocation3 + $0x68] sm:$0xff]
    %v39 = vld [vmem:[#allocation3 + $0x70] sm:$0xff]
    %v40 = vld [vmem:[#allocation3 + $0x78] sm:$0xff]
    %s41 = sld [smem:[#allocation2]]
    %v42 = vstv %s41
    %v43 = vmul.f32 %v25, %v42
    %v44 = vmul.f32 %v26, %v42
    %v45 = vmul.f32 %v27, %v42
    %v46 = vmul.f32 %v28, %v42
    %v47 = vmul.f32 %v29, %v42
    %v48 = vmul.f32 %v30, %v42
    %v49 = vmul.f32 %v31, %v42
    %v50 = vmul.f32 %v32, %v42
    %v51 = vmul.f32 %v33, %v42
    %v52 = vmul.f32 %v34, %v42
    %v53 = vmul.f32 %v35, %v42
    %v54 = vmul.f32 %v36, %v42
    %v55 = vmul.f32 %v37, %v42
    %v56 = vmul.f32 %v38, %v42
    %v57 = vmul.f32 %v39, %v42
    %v58 = vmul.f32 %v40, %v42
    %59 = vst [vmem:[#allocation6] sm:$0xff] %v43
    %60 = vst [vmem:[#allocation6 + $0x8] sm:$0xff] %v44
    %61 = vst [vmem:[#allocation6 + $0x10] sm:$0xff] %v45
    %62 = vst [vmem:[#allocation6 + $0x18] sm:$0xff] %v46
    %63 = vst [vmem:[#allocation6 + $0x20] sm:$0xff] %v47
    %64 = vst [vmem:[#allocation6 + $0x28] sm:$0xff] %v48
    %65 = vst [vmem:[#allocation6 + $0x30] sm:$0xff] %v49
    %66 = vst [vmem:[#allocation6 + $0x38] sm:$0xff] %v50
    %67 = vst [vmem:[#allocation6 + $0x40] sm:$0xff] %v51
    %68 = vst [vmem:[#allocation6 + $0x48] sm:$0xff] %v52
    %69 = vst [vmem:[#allocation6 + $0x50] sm:$0xff] %v53
    %70 = vst [vmem:[#allocation6 + $0x58] sm:$0xff] %v54
    %71 = vst [vmem:[#allocation6 + $0x60] sm:$0xff] %v55
    %72 = vst [vmem:[#allocation6 + $0x68] sm:$0xff] %v56
    %73 = vst [vmem:[#allocation6 + $0x70] sm:$0xff] %v57
    %74 = vst [vmem:[#allocation6 + $0x78] sm:$0xff] %v58
    // Predicated region
    $region14: #{tpu_custom_call.1} parent=1 // pred_check
      _
    $region15: #{tpu_custom_call.1} parent=1 // pred_check_branch
      %76 = sbr.rel (0) target = $region17
    $region16: #{tpu_custom_call.1} parent=1 // pred_region
      %s78 = ssub.s32 2048, 2048
      %79 = vsyncadd [#allocation5], %s78
      %s81 = sshll.u32 [#allocation6], 4
      %s82 = int_to_ptr.vmem [resolvable:$true] %s81
      %84 = dma.vmem_to_hbm [thread:$0]  %s82, 2048, %s2, [#allocation5]
    $region17: #{tpu_custom_call.1} parent=1 // pred_fallthru
      _
    // Predicated region
    $region18: #{tpu_custom_call.1} parent=1 // pred_check
      _
    $region19: #{tpu_custom_call.1} parent=1 // pred_check_branch
      %86 = sbr.rel (0) target = $region21
    $region20: #{tpu_custom_call.1} parent=1 // pred_region
      %87 = dma.done [#allocation5], 2048
    $region21: #{tpu_custom_call.1} parent=1 // pred_fallthru
      _
    %88 = vsyncpa [#allocation4], 1
    %89 = vsyncpa [#allocation5], 1

</llo_original>
